<compile_context>
chip_gen: v7x
topology: tpu7x:2x2x1
jax: 0.10.0
libtpu: 0.0.40
codegen_flags: <defaults>
</compile_context>

<pallas_src>
import functools

import jax
import jax.numpy as jnp
from jax import lax
from jax.experimental import pallas as pl
from jax.experimental.pallas import tpu as pltpu

LANES = 128
SUBLANES = 8
MAX_TILE_ROWS = 512  # (512,128) f32 = 256 KiB per input block


def _focal_loss_kernel(logits_ref, label_ref, out_ref, acc_ref,
                       *, alpha, gamma, n_valid, tail_valid, tile_elems):
    i = pl.program_id(0)
    last = pl.num_programs(0) - 1

    @pl.when(i == 0)
    def _init():
        acc_ref[...] = jnp.zeros_like(acc_ref)

    x = logits_ref[...]
    y = label_ref[...]

    # Shared transcendentals: exp(-|x|) and softplus(-|x|) = log1p(exp(-|x|)).
    e = jnp.exp(-jnp.abs(x))          # EUP
    s = jnp.log1p(e)                  # EUP
    inv = 1.0 / (1.0 + e)             # exact divide (pl.reciprocal(approx=True)
                                      # would be cheaper if accuracy budget allows)
    nonneg = x >= 0

    probs = jnp.where(nonneg, inv, e * inv)         # sigmoid(x)
    log_probs = jnp.where(nonneg, -s, x - s)        # log(sigmoid(x))
    log_1_probs = jnp.where(nonneg, -x - s, -s)     # log(1 - sigmoid(x))

    coeff = -(jnp.abs(y - probs) ** gamma)          # gamma is a static int
    loss = (y * alpha * log_probs
            + (1.0 - y) * (1.0 - alpha) * log_1_probs) * coeff

    def _accum(v):
        # Sublane reduce into the lane-wide VMEM accumulator.
        acc_ref[...] += jnp.sum(v, axis=0, keepdims=True)

    if tail_valid < tile_elems:
        # Only the final tile contains padding / out-of-bounds rows.
        @pl.when(i != last)
        def _steady():
            _accum(loss)

        @pl.when(i == last)
        def _tail():
            row = lax.broadcasted_iota(jnp.int32, loss.shape, 0)
            col = lax.broadcasted_iota(jnp.int32, loss.shape, 1)
            local = row * LANES + col               # < tile_elems <= 65536
            _accum(jnp.where(local < tail_valid, loss, 0.0))
    else:
        _accum(loss)

    @pl.when(i == last)
    def _finalize():
        out_ref[...] = (jnp.sum(acc_ref[...], axis=1, keepdims=True)
                        / jnp.float32(n_valid))     # reduction='mean'


def focal_loss_v1(logits, label, *, alpha=0.39, gamma=2):
    """Mean-reduced focal loss; logits/label any matching shape."""
    assert logits.shape == label.shape
    n_valid = int(logits.size)

    x = logits.reshape(-1).astype(jnp.float32)
    y = label.reshape(-1).astype(jnp.float32)

    # Pad flat length only up to one (8,128) vreg (<= 1023 elements); common
    # conv feature-map sizes need no pad at all.
    vreg_elems = SUBLANES * LANES
    padded = pl.cdiv(n_valid, vreg_elems) * vreg_elems
    if padded != n_valid:
        x = jnp.pad(x, (0, padded - n_valid))
        y = jnp.pad(y, (0, padded - n_valid))

    rows = padded // LANES                 # multiple of 8
    tile_rows = min(MAX_TILE_ROWS, rows)   # multiple of 8
    tile_elems = tile_rows * LANES
    num_tiles = pl.cdiv(rows, tile_rows)
    # Valid elements inside the last tile (handles both zero-pad and the
    # partial final block).
    tail_valid = n_valid - (num_tiles - 1) * tile_elems

    x2 = x.reshape(rows, LANES)
    y2 = y.reshape(rows, LANES)

    kernel = functools.partial(
        _focal_loss_kernel,
        alpha=float(alpha), gamma=int(gamma), n_valid=n_valid,
        tail_valid=int(tail_valid), tile_elems=int(tile_elems))

    out = pl.pallas_call(
        kernel,
        out_shape=jax.ShapeDtypeStruct((1, 1), jnp.float32),
        grid_spec=pltpu.PrefetchScalarGridSpec(
            num_scalar_prefetch=0,
            grid=(num_tiles,),
            in_specs=[
                pl.BlockSpec((tile_rows, LANES), lambda i: (i, 0)),
                pl.BlockSpec((tile_rows, LANES), lambda i: (i, 0)),
            ],
            out_specs=pl.BlockSpec((1, 1), lambda i: (0, 0)),
            scratch_shapes=[pltpu.VMEM((1, LANES), jnp.float32)],
        ),
        compiler_params=pltpu.CompilerParams(
            dimension_semantics=("arbitrary",)),
    )(x2, y2)
    return out[0, 0]


def _focal_loss_ref(logits, label, alpha=0.39, gamma=2):
    logits = logits.astype(jnp.float32)
    label = label.astype(jnp.float32)
    probs = jax.nn.sigmoid(logits)
    coeff = -(jnp.abs(label - probs) ** gamma)
    log_probs = jnp.where(logits >= 0,
                          -jnp.log1p(jnp.exp(-logits)),
                          logits - jnp.log1p(jnp.exp(logits)))
    log_1_probs = jnp.where(logits >= 0,
                            -logits - jnp.log1p(jnp.exp(-logits)),
                            -jnp.log1p(jnp.exp(logits)))
    loss = label * alpha * log_probs + (1.0 - label) * (1.0 - alpha) * log_1_probs
    return jnp.mean(loss * coeff)


if __name__ == "__main__":
    key = jax.random.PRNGKey(0)
    k1, k2, k3, k4 = jax.random.split(key, 4)

    # NCHW: batch=2, channels=4, spatial=16x16 (aligned, no padding path).
    logits = jax.random.normal(k1, (2, 4, 16, 16), dtype=jnp.float32)
    label = jax.random.bernoulli(k2, p=0.5, shape=(2, 4, 16, 16)).astype(jnp.float32)
    loss = focal_loss_v1(logits, label, alpha=0.39, gamma=2)
    jax.block_until_ready(loss)
    ref = _focal_loss_ref(logits, label, alpha=0.39, gamma=2)
    assert jnp.allclose(loss, ref, rtol=1e-5, atol=1e-6), (loss, ref)

    # Ragged size (exercises the masked-tail path).
    logits_r = jax.random.normal(k3, (2, 3, 7, 5), dtype=jnp.float32)
    label_r = jax.random.bernoulli(k4, p=0.5, shape=(2, 3, 7, 5)).astype(jnp.float32)
    loss_r = focal_loss_v1(logits_r, label_r, alpha=0.39, gamma=2)
    jax.block_until_ready(loss_r)
    ref_r = _focal_loss_ref(logits_r, label_r, alpha=0.39, gamma=2)
    assert jnp.allclose(loss_r, ref_r, rtol=1e-5, atol=1e-6), (loss_r, ref_r)

    print("KERNEL_OK")
</pallas_src>

<mosaic_0001>
module attributes {stable_mosaic.version = 11 : i64} {
  func.func @_focal_loss_kernel(%arg0: i32, %arg1: memref<16x128xf32, #tpu.memory_space<vmem>>, %arg2: memref<16x128xf32, #tpu.memory_space<vmem>>, %arg3: memref<1x1xf32, #tpu.memory_space<vmem>>, %arg4: memref<1x128xf32, #tpu.memory_space<vmem>>) attributes {dimension_semantics = [#tpu.dimension_semantics<arbitrary>], iteration_bounds = array<i64: 1>, scalar_prefetch = 0 : i64, scratch_operands = 1 : i64, tpu.core_type = #tpu.core_type<tc>, window_params = [{transform_indices = @transform_0, window_bounds = array<i64: 16, 128>}, {transform_indices = @transform_1, window_bounds = array<i64: 16, 128>}, {pipeline_mode = #tpu.pipeline_mode<synchronous>, transform_indices = @transform_2, window_bounds = array<i64: 1, 1>}]} {
    %c0_i32 = arith.constant 0 : i32
    %0 = arith.cmpi eq, %arg0, %c0_i32 : i32
    %1 = arith.extui %0 : i1 to i32
    %c0_i32_0 = arith.constant 0 : i32
    %2 = arith.cmpi ne, %1, %c0_i32_0 : i32
    scf.if %2 {
      %cst_21 = arith.constant 0.000000e+00 : f32
      %51 = vector.broadcast %cst_21 : f32 to vector<1x128xf32>
      %c0_22 = arith.constant 0 : index
      %c0_23 = arith.constant 0 : index
      %52 = vector.load %arg4[%c0_22, %c0_23] : memref<1x128xf32, #tpu.memory_space<vmem>>, vector<1x128xf32>
      tpu.vector_store %arg4[%c0_22, %c0_23], %51 {strides = array<i32>} : memref<1x128xf32, #tpu.memory_space<vmem>>, vector<1x128xf32>,
    } else {
    }
    %c0 = arith.constant 0 : index
    %c0_1 = arith.constant 0 : index
    %3 = vector.load %arg1[%c0, %c0_1] : memref<16x128xf32, #tpu.memory_space<vmem>>, vector<16x128xf32>
    %c0_2 = arith.constant 0 : index
    %c0_3 = arith.constant 0 : index
    %4 = vector.load %arg2[%c0_2, %c0_3] : memref<16x128xf32, #tpu.memory_space<vmem>>, vector<16x128xf32>
    %5 = math.absf %3 : vector<16x128xf32>
    %cst = arith.constant 0.000000e+00 : f32
    %6 = vector.broadcast %cst : f32 to vector<16x128xf32>
    %7 = arith.subf %6, %5 : vector<16x128xf32>
    %8 = math.exp %7 : vector<16x128xf32>
    %9 = math.log1p %8 : vector<16x128xf32>
    %cst_4 = arith.constant 1.000000e+00 : f32
    %10 = vector.broadcast %cst_4 : f32 to vector<16x128xf32>
    %11 = arith.addf %10, %8 : vector<16x128xf32>
    %cst_5 = arith.constant 1.000000e+00 : f32
    %12 = vector.broadcast %cst_5 : f32 to vector<16x128xf32>
    %13 = arith.divf %12, %11 : vector<16x128xf32>
    %cst_6 = arith.constant 0.000000e+00 : f32
    %14 = vector.broadcast %cst_6 : f32 to vector<16x128xf32>
    %15 = arith.cmpf oge, %3, %14 : vector<16x128xf32>
    %16 = arith.mulf %8, %13 : vector<16x128xf32>
    %17 = arith.select %15, %13, %16 : vector<16x128xi1>, vector<16x128xf32>
    %cst_7 = arith.constant 0.000000e+00 : f32
    %18 = vector.broadcast %cst_7 : f32 to vector<16x128xf32>
    %19 = arith.subf %18, %9 : vector<16x128xf32>
    %20 = arith.subf %3, %9 : vector<16x128xf32>
    %21 = arith.select %15, %19, %20 : vector<16x128xi1>, vector<16x128xf32>
    %cst_8 = arith.constant 0.000000e+00 : f32
    %22 = vector.broadcast %cst_8 : f32 to vector<16x128xf32>
    %23 = arith.subf %22, %3 : vector<16x128xf32>
    %24 = arith.subf %23, %9 : vector<16x128xf32>
    %cst_9 = arith.constant 0.000000e+00 : f32
    %25 = vector.broadcast %cst_9 : f32 to vector<16x128xf32>
    %26 = arith.subf %25, %9 : vector<16x128xf32>
    %27 = arith.select %15, %24, %26 : vector<16x128xi1>, vector<16x128xf32>
    %28 = arith.subf %4, %17 : vector<16x128xf32>
    %29 = math.absf %28 : vector<16x128xf32>
    %30 = arith.mulf %29, %29 : vector<16x128xf32>
    %cst_10 = arith.constant 0.000000e+00 : f32
    %31 = vector.broadcast %cst_10 : f32 to vector<16x128xf32>
    %32 = arith.subf %31, %30 : vector<16x128xf32>
    %cst_11 = arith.constant 3.900000e-01 : f32
    %33 = vector.broadcast %cst_11 : f32 to vector<16x128xf32>
    %34 = arith.mulf %4, %33 : vector<16x128xf32>
    %35 = arith.mulf %34, %21 : vector<16x128xf32>
    %cst_12 = arith.constant 1.000000e+00 : f32
    %36 = vector.broadcast %cst_12 : f32 to vector<16x128xf32>
    %37 = arith.subf %36, %4 : vector<16x128xf32>
    %cst_13 = arith.constant 6.100000e-01 : f32
    %38 = vector.broadcast %cst_13 : f32 to vector<16x128xf32>
    %39 = arith.mulf %37, %38 : vector<16x128xf32>
    %40 = arith.mulf %39, %27 : vector<16x128xf32>
    %41 = arith.addf %35, %40 : vector<16x128xf32>
    %42 = arith.mulf %41, %32 : vector<16x128xf32>
    %c0_14 = arith.constant 0 : index
    %c0_15 = arith.constant 0 : index
    %43 = vector.load %arg4[%c0_14, %c0_15] : memref<1x128xf32, #tpu.memory_space<vmem>>, vector<1x128xf32>
    %cst_16 = arith.constant dense<0.000000e+00> : vector<128xf32>
    %44 = vector.multi_reduction <add>, %42, %cst_16 [0] : vector<16x128xf32> to vector<128xf32>
    %45 = vector.shape_cast %44 : vector<128xf32> to vector<1x128xf32>
    %46 = arith.addf %43, %45 : vector<1x128xf32>
    %c0_17 = arith.constant 0 : index
    %c0_18 = arith.constant 0 : index
    %47 = vector.load %arg4[%c0_17, %c0_18] : memref<1x128xf32, #tpu.memory_space<vmem>>, vector<1x128xf32>
    tpu.vector_store %arg4[%c0_17, %c0_18], %46 {strides = array<i32>} : memref<1x128xf32, #tpu.memory_space<vmem>>, vector<1x128xf32>,
    %c0_i32_19 = arith.constant 0 : i32
    %48 = arith.cmpi eq, %arg0, %c0_i32_19 : i32
    %49 = arith.extui %48 : i1 to i32
    %c0_i32_20 = arith.constant 0 : i32
    %50 = arith.cmpi ne, %49, %c0_i32_20 : i32
    scf.if %50 {
      %c0_21 = arith.constant 0 : index
      %c0_22 = arith.constant 0 : index
      %51 = vector.load %arg4[%c0_21, %c0_22] : memref<1x128xf32, #tpu.memory_space<vmem>>, vector<1x128xf32>
      %cst_23 = arith.constant dense<0.000000e+00> : vector<1xf32>
      %52 = vector.multi_reduction <add>, %51, %cst_23 [1] : vector<1x128xf32> to vector<1xf32>
      %53 = vector.shape_cast %52 : vector<1xf32> to vector<1x1xf32>
      %cst_24 = arith.constant 2.048000e+03 : f32
      %54 = vector.broadcast %cst_24 : f32 to vector<1x1xf32>
      %55 = arith.divf %53, %54 : vector<1x1xf32>
      %c0_25 = arith.constant 0 : index
      %c0_26 = arith.constant 0 : index
      %56 = vector.load %arg3[%c0_25, %c0_26] : memref<1x1xf32, #tpu.memory_space<vmem>>, vector<1x1xf32>
      tpu.vector_store %arg3[%c0_25, %c0_26], %55 {strides = array<i32>} : memref<1x1xf32, #tpu.memory_space<vmem>>, vector<1x1xf32>,
    } else {
    }
    return
  }
  func.func @transform_0(%arg0: i32) -> (i32, i32) {
    %c0_i32 = arith.constant 0 : i32
    %c0_i32_0 = arith.constant 0 : i32
    return %arg0, %c0_i32 : i32, i32
  }
  func.func @transform_1(%arg0: i32) -> (i32, i32) {
    %c0_i32 = arith.constant 0 : i32
    %c0_i32_0 = arith.constant 0 : i32
    return %arg0, %c0_i32 : i32, i32
  }
  func.func @transform_2(%arg0: i32) -> (i32, i32) {
    %c0_i32 = arith.constant 0 : i32
    %c0_i32_0 = arith.constant 0 : i32
    %c0_i32_1 = arith.constant 0 : i32
    return %c0_i32, %c0_i32_0 : i32, i32
  }
}

</mosaic_0001>

<llo_original>
// kernel: tpu_custom_call.1
$region0: #{tpu_custom_call.1}
  #allocation0 [shape = 'u32[]', space=smem, size = 0x4, offset = 0x4, fixed_abs, tag = 'smem constant byte address 0x4 - core index']
  #allocation1 [shape = 'u32[144,128]{1,0:T(1,128)}', space=vmem, size = 0x12000, scoped, tag = 'internal scratch']
  #allocation2 [shape = 'f32[1,128]{1,0:T(1,128)}', space=vmem, size = 0x200, scoped, tag = 'scratch operand']
  %s0 = inlined_call_operand.hbm [shape: f32[16,128], index: 0, kind: input, shape index: {}]
  %s1 = inlined_call_operand.hbm [shape: f32[16,128], index: 1, kind: input, shape index: {}]
  %s2 = inlined_call_operand.hbm [shape: f32[1,1], index: 2, kind: output, shape index: {}]
  %s3 = sld [smem:[#allocation0]]
  $region34: #{tpu_custom_call.1} parent=0
    _
  %s5 = ssub.s32 1, %s3
  %s6 = scalar_select 0, %s5, %s3
  $region1: #{tpu_custom_call.1} parent=0
    #allocation3 [shape = 'u8[8192]{0}', space=vmem, size = 0x2000, scoped, tag = 'input window, operand 0, single buffered']
    #allocation4 [shape = 's32[1]{0}', space=sflag, size = 0x4, scoped, tag = 'scoped memory for tpu_custom_call.1']
    #allocation5 [shape = 's32[1]{0}', space=sflag, size = 0x4, scoped, tag = 'scoped memory for tpu_custom_call.1']
    #allocation6 [shape = 'u8[8192]{0}', space=vmem, size = 0x2000, scoped, tag = 'input window, operand 1, single buffered']
    #allocation7 [shape = 's32[1]{0}', space=sflag, size = 0x4, scoped, tag = 'scoped memory for tpu_custom_call.1']
    #allocation8 [shape = 'u8[512]{0}', space=vmem, size = 0x400, scoped, tag = 'output window, operand 0, single buffered']
    %7 = vsyncpa [#allocation4], 0
    %8 = vsyncpa [#allocation7], 0
    %9 = vsyncpa [#allocation5], 0
    // Predicated region
    $region2: #{tpu_custom_call.1} parent=1 // pred_check
      _
    $region3: #{tpu_custom_call.1} parent=1 // pred_check_branch
      %11 = sbr.rel (0) target = $region5
    $region4: #{tpu_custom_call.1} parent=1 // pred_region
      %s13 = ssub.s32 256, 256
      %14 = vsyncadd [#allocation4], %s13
      %s15 = sshll.u32 [#allocation3], 4
      %s16 = int_to_ptr.vmem [resolvable:$true] %s15
      %21 = dma.hbm_to_vmem [thread:$0]  %s0, 256, %s16, [#allocation4], 128, 128, 8
    $region5: #{tpu_custom_call.1} parent=1 // pred_fallthru
      _
    // Predicated region
    $region6: #{tpu_custom_call.1} parent=1 // pred_check
      _
    $region7: #{tpu_custom_call.1} parent=1 // pred_check_branch
      %23 = sbr.rel (0) target = $region9
    $region8: #{tpu_custom_call.1} parent=1 // pred_region
      %s25 = ssub.s32 256, 256
      %26 = vsyncadd [#allocation7], %s25
      %s27 = sshll.u32 [#allocation6], 4
      %s28 = int_to_ptr.vmem [resolvable:$true] %s27
      %33 = dma.hbm_to_vmem [thread:$0]  %s1, 256, %s28, [#allocation7], 128, 128, 8
    $region9: #{tpu_custom_call.1} parent=1 // pred_fallthru
      _
    // Predicated region
    $region10: #{tpu_custom_call.1} parent=1 // pred_check
      _
    $region11: #{tpu_custom_call.1} parent=1 // pred_check_branch
      %35 = sbr.rel (0) target = $region13
    $region12: #{tpu_custom_call.1} parent=1 // pred_region
      %36 = dma.done [#allocation4], 256
    $region13: #{tpu_custom_call.1} parent=1 // pred_fallthru
      _
    // Predicated region
    $region14: #{tpu_custom_call.1} parent=1 // pred_check
      _
    $region15: #{tpu_custom_call.1} parent=1 // pred_check_branch
      %38 = sbr.rel (0) target = $region17
    $region16: #{tpu_custom_call.1} parent=1 // pred_region
      %39 = dma.done [#allocation7], 256
    $region17: #{tpu_custom_call.1} parent=1 // pred_fallthru
      _
    %p40 = scmp.eq.s32.totalorder 0, 0
    // Predicated region
    $region18: #{tpu_custom_call.1} parent=1 // pred_check
      %p41 = pneg %p40
    $region19: #{tpu_custom_call.1} parent=1 // pred_check_branch
      %43 = sbr.rel (%p41) target = $region21
    $region20: #{tpu_custom_call.1} parent=1 // pred_region
      %44 = vst [vmem:[#allocation2] sm:$0x1] 0.0
    $region21: #{tpu_custom_call.1} parent=1 // pred_fallthru
      _
    %v45 = vld [vmem:[#allocation3] sm:$0xff]
    %v46 = vld [vmem:[#allocation3 + $0x8] sm:$0xff]
    %v47 = vld [vmem:[#allocation6] sm:$0xff]
    %v48 = vld [vmem:[#allocation6 + $0x8] sm:$0xff]
    %v49 = vand.u32 2147483647, %v45
    %v50 = vand.u32 2147483647, %v46
    %v51 = vsub.f32 0.0, %v49
    %v52 = vsub.f32 0.0, %v50
    %v53 = vmul.f32 %v51, 1.442695
    %v54 = vpow.pop %v53
    %v55 = vmul.f32 %v52, 1.442695
    %v56 = vpow.pop %v55
    %v57 = vadd.f32 %v54, 1.0
    %v58 = vlog2.pop %v57
    %v59 = vmul.f32 %v58, 0.6931472
    %v60 = vmul.f32 -0.5, %v54
    %v61 = vadd.f32 %v60, 1.0
    %v62 = vmul.f32 %v61, %v54
    %v63 = vand.u32 2147483647, %v54
    %vm64 = vcmp.lt.f32.partialorder %v63, 0.0004427343
    %v65 = vsel %vm64, %v62, %v59
    %v66 = vadd.f32 %v56, 1.0
    %v67 = vlog2.pop %v66
    %v68 = vmul.f32 %v67, 0.6931472
    %v69 = vmul.f32 -0.5, %v56
    %v70 = vadd.f32 %v69, 1.0
    %v71 = vmul.f32 %v70, %v56
    %v72 = vand.u32 2147483647, %v56
    %vm73 = vcmp.lt.f32.partialorder %v72, 0.0004427343
    %v74 = vsel %vm73, %v71, %v68
    %v75 = vadd.f32 %v54, 1.0
    %v76 = vadd.f32 %v56, 1.0
    %v77 = vrcp.pop %v75
    %v78 = vmul.f32 1.0, %v77
    %v79 = vrcp.pop %v76
    %v80 = vmul.f32 1.0, %v79
    %vm81 = vcmp.ge.f32.partialorder %v45, 0.0
    %vm82 = vcmp.ge.f32.partialorder %v46, 0.0
    %v83 = vmul.f32 %v54, %v78
    %v84 = vmul.f32 %v56, %v80
    %v85 = vsel %vm81, %v78, %v83
    %v86 = vsel %vm82, %v80, %v84
    %v87 = vsub.f32 0.0, %v65
    %v88 = vsub.f32 0.0, %v74
    %v89 = vsub.f32 %v45, %v65
    %v90 = vsub.f32 %v46, %v74
    %v91 = vsel %vm81, %v87, %v89
    %v92 = vsel %vm82, %v88, %v90
    %v93 = vsub.f32 0.0, %v45
    %v94 = vsub.f32 0.0, %v46
    %v95 = vsub.f32 %v93, %v65
    %v96 = vsub.f32 %v94, %v74
    %v97 = vsel %vm81, %v95, %v87
    %v98 = vsel %vm82, %v96, %v88
    %v99 = vsub.f32 %v47, %v85
    %v100 = vsub.f32 %v48, %v86
    %v101 = vand.u32 2147483647, %v99
    %v102 = vand.u32 2147483647, %v100
    %v103 = vmul.f32 %v101, %v101
    %v104 = vmul.f32 %v102, %v102
    %v105 = vsub.f32 0.0, %v103
    %v106 = vsub.f32 0.0, %v104
    %v107 = vmul.f32 %v47, 0.39
    %v108 = vmul.f32 %v48, 0.39
    %v109 = vmul.f32 %v107, %v91
    %v110 = vmul.f32 %v108, %v92
    %v111 = vsub.f32 1.0, %v47
    %v112 = vsub.f32 1.0, %v48
    %v113 = vmul.f32 %v111, 0.61
    %v114 = vmul.f32 %v112, 0.61
    %v115 = vmul.f32 %v113, %v97
    %v116 = vmul.f32 %v114, %v98
    %v117 = vadd.f32 %v109, %v115
    %v118 = vadd.f32 %v110, %v116
    %v119 = vmul.f32 %v117, %v105
    %v120 = vmul.f32 %v118, %v106
    %v121 = vld [vmem:[#allocation2] sm:$0x1]
    %v122 = vadd.f32 %v119, %v120
    %v123 = vrot.slane %v122, 4
    %v124 = vadd.f32 %v122, %v123
    %v125 = vrot.slane %v124, 2
    %v126 = vadd.f32 %v124, %v125
    %v127 = vrot.slane %v126, 1
    %v128 = vadd.f32 %v126, %v127
    %v129 = vadd.f32 %v121, %v128
    %130 = vst [vmem:[#allocation2] sm:$0x1] %v129
    // Predicated region
    $region22: #{tpu_custom_call.1} parent=1 // pred_check
      %p131 = pneg %p40
    $region23: #{tpu_custom_call.1} parent=1 // pred_check_branch
      %133 = sbr.rel (%p131) target = $region25
    $region24: #{tpu_custom_call.1} parent=1 // pred_region
      %v134 = vld [vmem:[#allocation2] sm:$0x1]
      %vm135 = vcmask 1040384
      %v136 = vsel %vm135, %v134, 0.0
      %137 = vadd.xlane.f32.xlu0 %v136
      %v138 = vpop.xlane.xlu0 %137
      %v139 = vrcp.pop 2048.0
      %v140 = vmul.f32 %v138, %v139
      %vm141 = vcmask 0
      %142 = vst.msk [vmem:[#allocation8] sm:$0x1] %vm141, %v140
    $region25: #{tpu_custom_call.1} parent=1 // pred_fallthru
      _
    // Predicated region
    $region26: #{tpu_custom_call.1} parent=1 // pred_check
      _
    $region27: #{tpu_custom_call.1} parent=1 // pred_check_branch
      %144 = sbr.rel (0) target = $region29
    $region28: #{tpu_custom_call.1} parent=1 // pred_region
      %s146 = ssub.s32 16, 16
      %147 = vsyncadd [#allocation5], %s146
      %s149 = sshll.u32 [#allocation8], 4
      %s150 = int_to_ptr.vmem [resolvable:$true] %s149
      %152 = dma.vmem_to_hbm [thread:$0]  %s150, 16, %s2, [#allocation5]
    $region29: #{tpu_custom_call.1} parent=1 // pred_fallthru
      _
    // Predicated region
    $region30: #{tpu_custom_call.1} parent=1 // pred_check
      _
    $region31: #{tpu_custom_call.1} parent=1 // pred_check_branch
      %154 = sbr.rel (0) target = $region33
    $region32: #{tpu_custom_call.1} parent=1 // pred_region
      %155 = dma.done [#allocation5], 16
    $region33: #{tpu_custom_call.1} parent=1 // pred_fallthru
      _
    %156 = vsyncpa [#allocation4], 1
    %157 = vsyncpa [#allocation7], 1
    %158 = vsyncpa [#allocation5], 1

</llo_original>
